<compile_context>
chip_gen: v7x
topology: tpu7x:2x2x1
jax: 0.10.0
libtpu: 0.0.40
codegen_flags: <defaults>
</compile_context>

<pallas_src>
import jax
import jax.numpy as jnp
from jax.experimental import pallas as pl
from jax.experimental.pallas import tpu as pltpu


# ---------------- Pallas kernel: GeluFeedForward on the embedding table ----------------

def _gelu_ff_kernel(x_ref, w1_ref, b1_ref, w2_ref, b2_ref, o_ref):
    x = x_ref[...].astype(jnp.float32)
    h = jnp.dot(x, w1_ref[...].astype(jnp.float32),
                preferred_element_type=jnp.float32) + b1_ref[...].astype(jnp.float32)
    # Exact (erf) GELU — matches torch.nn.GELU default (approximate='none').
    h = 0.5 * h * (1.0 + jax.lax.erf(h * 0.7071067811865476))
    y = jnp.dot(h, w2_ref[...].astype(jnp.float32),
                preferred_element_type=jnp.float32) + b2_ref[...].astype(jnp.float32)
    # TODO(synk): dropout is identity here (eval mode / dropout=0.0); a training
    # path would need pltpu.prng_seed + pltpu.prng_random_bits masking.
    o_ref[...] = y.astype(o_ref.dtype)


def gelu_feedforward_pallas(x, w1, b1, w2, b2):
    """x: (N, E_in); w1: (E_in, E_hid); b1: (1, E_hid); w2: (E_hid, E_out); b2: (1, E_out).

    Single full-array block (no grid): everything — inputs, both weight
    matrices and the output — lives in VMEM for the duration of the call.
    """
    n, _ = x.shape
    e_out = w2.shape[1]
    vmem = pl.BlockSpec(memory_space=pltpu.MemorySpace.VMEM)
    return pl.pallas_call(
        _gelu_ff_kernel,
        out_shape=jax.ShapeDtypeStruct((n, e_out), x.dtype),
        in_specs=[vmem, vmem, vmem, vmem, vmem],
        out_specs=vmem,
    )(x, w1, b1, w2, b2)


# ---------------- Glue (index construction, gather of FF'd rows, batch broadcast) ----------------

def distance_triangle(n):
    ar = jnp.arange(n, dtype=jnp.int32)
    mat = ar[:, None] - ar[None, :]
    return jnp.tril(mat)                       # zeros above the diagonal, values in [0, n)


def distance_positional_embedding(b, table, w1, b1, w2, b2, *, block_size):
    T, E = table.shape
    assert T == block_size, (T, block_size)
    # Dedup: FF(gather(table)) == gather(FF(table)) because the FF acts per row.
    y_table = gelu_feedforward_pallas(table, w1, b1.reshape(1, -1), w2, b2.reshape(1, -1))
    idx = distance_triangle(block_size)        # (T, T) int32
    y = y_table[idx]                           # (T, T, E) — cheap XLA gather of T distinct rows
    # pos_emb.repeat(b, 1, 1, 1): all batch copies are identical.
    # TODO(synk): if the consumer accepts (T, T, E), skip this broadcast to avoid
    # writing b redundant copies to HBM.
    return jnp.broadcast_to(y[None], (b, T, T, y.shape[-1]))


# ---------------- Pure-JAX reference for sanity check ----------------

def _reference(b, table, w1, b1, w2, b2, block_size):
    idx = distance_triangle(block_size)
    x = table[idx]                                            # (T, T, E)
    h = jnp.einsum('ije,ef->ijf', x, w1) + b1
    h = 0.5 * h * (1.0 + jax.lax.erf(h * 0.7071067811865476))
    y = jnp.einsum('ije,ef->ijf', h, w2) + b2
    return jnp.broadcast_to(y[None], (b,) + y.shape)


if __name__ == "__main__":
    # Config: block_size (T) = 16, n_embed (E) = 32, batch b = 2, dropout = 0.0
    T, E, B = 16, 32, 2

    key = jax.random.PRNGKey(0)
    k_tab, k_w1, k_b1, k_w2, k_b2 = jax.random.split(key, 5)
    table = jax.random.normal(k_tab, (T, E), dtype=jnp.float32)          # nn.Embedding weight
    w1 = jax.random.normal(k_w1, (E, E), dtype=jnp.float32) * 0.05       # Linear1 (E_in, E_out)
    b1 = jax.random.normal(k_b1, (E,), dtype=jnp.float32) * 0.05
    w2 = jax.random.normal(k_w2, (E, E), dtype=jnp.float32) * 0.05       # Linear2 (E_in, E_out)
    b2 = jax.random.normal(k_b2, (E,), dtype=jnp.float32) * 0.05

    out = distance_positional_embedding(B, table, w1, b1, w2, b2, block_size=T)
    out = jax.block_until_ready(out)

    ref = _reference(B, table, w1, b1, w2, b2, T)
    assert out.shape == (B, T, T, E), out.shape
    assert jnp.allclose(out, ref, atol=1e-5, rtol=1e-5), "mismatch vs reference"

    print("KERNEL_OK")
</pallas_src>

<mosaic_0001>
module attributes {stable_mosaic.version = 11 : i64} {
  func.func @_gelu_ff_kernel(%arg0: memref<16x32xf32, #tpu.memory_space<vmem>>, %arg1: memref<32x32xf32, #tpu.memory_space<vmem>>, %arg2: memref<1x32xf32, #tpu.memory_space<vmem>>, %arg3: memref<32x32xf32, #tpu.memory_space<vmem>>, %arg4: memref<1x32xf32, #tpu.memory_space<vmem>>, %arg5: memref<16x32xf32, #tpu.memory_space<vmem>>) attributes {dimension_semantics = [], scalar_prefetch = 0 : i64, scratch_operands = 0 : i64, tpu.core_type = #tpu.core_type<tc>} {
    %c0 = arith.constant 0 : index
    %c0_0 = arith.constant 0 : index
    %0 = vector.load %arg0[%c0, %c0_0] : memref<16x32xf32, #tpu.memory_space<vmem>>, vector<16x32xf32>
    %c0_1 = arith.constant 0 : index
    %c0_2 = arith.constant 0 : index
    %1 = vector.load %arg1[%c0_1, %c0_2] : memref<32x32xf32, #tpu.memory_space<vmem>>, vector<32x32xf32>
    %cst = arith.constant dense<0.000000e+00> : vector<16x32xf32>
    %2 = tpu.matmul %0, %1, %cst {dimension_numbers = #tpu.dot_dimension_numbers<[1], [0], [0], [1], [0, 0, 1, 1], [], []>} : vector<16x32xf32>, vector<32x32xf32>, vector<16x32xf32> -> vector<16x32xf32>
    %c0_3 = arith.constant 0 : index
    %c0_4 = arith.constant 0 : index
    %3 = vector.load %arg2[%c0_3, %c0_4] : memref<1x32xf32, #tpu.memory_space<vmem>>, vector<1x32xf32>
    %4 = vector.broadcast %3 : vector<1x32xf32> to vector<16x32xf32>
    %5 = arith.addf %2, %4 : vector<16x32xf32>
    %cst_5 = arith.constant 5.000000e-01 : f32
    %6 = vector.broadcast %cst_5 : f32 to vector<16x32xf32>
    %7 = arith.mulf %6, %5 : vector<16x32xf32>
    %cst_6 = arith.constant 0.707106769 : f32
    %8 = vector.broadcast %cst_6 : f32 to vector<16x32xf32>
    %9 = arith.mulf %5, %8 : vector<16x32xf32>
    %10 = math.erf %9 : vector<16x32xf32>
    %cst_7 = arith.constant 1.000000e+00 : f32
    %11 = vector.broadcast %cst_7 : f32 to vector<16x32xf32>
    %12 = arith.addf %11, %10 : vector<16x32xf32>
    %13 = arith.mulf %7, %12 : vector<16x32xf32>
    %c0_8 = arith.constant 0 : index
    %c0_9 = arith.constant 0 : index
    %14 = vector.load %arg3[%c0_8, %c0_9] : memref<32x32xf32, #tpu.memory_space<vmem>>, vector<32x32xf32>
    %cst_10 = arith.constant dense<0.000000e+00> : vector<16x32xf32>
    %15 = tpu.matmul %13, %14, %cst_10 {dimension_numbers = #tpu.dot_dimension_numbers<[1], [0], [0], [1], [0, 0, 1, 1], [], []>} : vector<16x32xf32>, vector<32x32xf32>, vector<16x32xf32> -> vector<16x32xf32>
    %c0_11 = arith.constant 0 : index
    %c0_12 = arith.constant 0 : index
    %16 = vector.load %arg4[%c0_11, %c0_12] : memref<1x32xf32, #tpu.memory_space<vmem>>, vector<1x32xf32>
    %17 = vector.broadcast %16 : vector<1x32xf32> to vector<16x32xf32>
    %18 = arith.addf %15, %17 : vector<16x32xf32>
    %c0_13 = arith.constant 0 : index
    %c0_14 = arith.constant 0 : index
    %19 = vector.load %arg5[%c0_13, %c0_14] : memref<16x32xf32, #tpu.memory_space<vmem>>, vector<16x32xf32>
    tpu.vector_store %arg5[%c0_13, %c0_14], %18 {strides = array<i32>} : memref<16x32xf32, #tpu.memory_space<vmem>>, vector<16x32xf32>,
    return
  }
}

</mosaic_0001>

<llo_original>
// kernel: tpu_custom_call.1
$region0: #{tpu_custom_call.1}
  #allocation0 [shape = 'u32[]', space=smem, size = 0x4, offset = 0x4, fixed_abs, tag = 'smem constant byte address 0x4 - core index']
  #allocation1 [shape = 'u32[144,128]{1,0:T(1,128)}', space=vmem, size = 0x12000, scoped, tag = 'internal scratch']
  %s0 = inlined_call_operand.hbm [shape: f32[16,32], index: 0, kind: input, shape index: {}]
  %s1 = inlined_call_operand.hbm [shape: f32[32,32], index: 1, kind: input, shape index: {}]
  %s2 = inlined_call_operand.vmem [shape: f32[1,32], index: 2, kind: input, shape index: {}]
  %s3 = inlined_call_operand.hbm [shape: f32[32,32], index: 3, kind: input, shape index: {}]
  %s4 = inlined_call_operand.vmem [shape: f32[1,32], index: 4, kind: input, shape index: {}]
  %s5 = inlined_call_operand.hbm [shape: f32[16,32], index: 5, kind: output, shape index: {}]
  %s6 = sld [smem:[#allocation0]]
  $region42: #{tpu_custom_call.1} parent=0
    _
  %s8 = ssub.s32 1, %s6
  %s9 = scalar_select 0, %s8, %s6
  $region1: #{tpu_custom_call.1} parent=0
    #allocation2 [shape = 'u8[8192]{0}', space=vmem, size = 0x2000, scoped, tag = 'input window, operand 0, single buffered']
    #allocation3 [shape = 's32[1]{0}', space=sflag, size = 0x4, scoped, tag = 'scoped memory for tpu_custom_call.1']
    #allocation4 [shape = 's32[1]{0}', space=sflag, size = 0x4, scoped, tag = 'scoped memory for tpu_custom_call.1']
    #allocation5 [shape = 'u8[16384]{0}', space=vmem, size = 0x4000, scoped, tag = 'input window, operand 1, single buffered']
    #allocation6 [shape = 's32[1]{0}', space=sflag, size = 0x4, scoped, tag = 'scoped memory for tpu_custom_call.1']
    #allocation7 [shape = 'u8[16384]{0}', space=vmem, size = 0x4000, scoped, tag = 'input window, operand 3, single buffered']
    #allocation8 [shape = 'u8[8192]{0}', space=vmem, size = 0x2000, scoped, tag = 'output window, operand 0, single buffered']
    %10 = vsyncpa [#allocation3], 0
    %11 = vsyncpa [#allocation6], 0
    %12 = vsyncpa [#allocation4], 0
    // Predicated region
    $region2: #{tpu_custom_call.1} parent=1 // pred_check
      _
    $region3: #{tpu_custom_call.1} parent=1 // pred_check_branch
      %14 = sbr.rel (0) target = $region5
    $region4: #{tpu_custom_call.1} parent=1 // pred_region
      %s16 = ssub.s32 256, 256
      %17 = vsyncadd [#allocation3], %s16
      %s18 = sshll.u32 [#allocation2], 4
      %s19 = int_to_ptr.vmem [resolvable:$true] %s18
      %24 = dma.hbm_to_vmem [thread:$0]  %s0, 256, %s19, [#allocation3], 128, 128, 8
    $region5: #{tpu_custom_call.1} parent=1 // pred_fallthru
      _
    // Predicated region
    $region6: #{tpu_custom_call.1} parent=1 // pred_check
      _
    $region7: #{tpu_custom_call.1} parent=1 // pred_check_branch
      %26 = sbr.rel (0) target = $region9
    $region8: #{tpu_custom_call.1} parent=1 // pred_region
      %s28 = ssub.s32 512, 512
      %29 = vsyncadd [#allocation6], %s28
      %s30 = sshll.u32 [#allocation5], 4
      %s31 = int_to_ptr.vmem [resolvable:$true] %s30
      %36 = dma.hbm_to_vmem [thread:$0]  %s1, 512, %s31, [#allocation6], 128, 128, 8
    $region9: #{tpu_custom_call.1} parent=1 // pred_fallthru
      _
    // Predicated region
    $region10: #{tpu_custom_call.1} parent=1 // pred_check
      _
    $region11: #{tpu_custom_call.1} parent=1 // pred_check_branch
      %38 = sbr.rel (0) target = $region13
    $region12: #{tpu_custom_call.1} parent=1 // pred_region
      _
    $region13: #{tpu_custom_call.1} parent=1 // pred_fallthru
      _
    // Predicated region
    $region14: #{tpu_custom_call.1} parent=1 // pred_check
      _
    $region15: #{tpu_custom_call.1} parent=1 // pred_check_branch
      %40 = sbr.rel (0) target = $region17
    $region16: #{tpu_custom_call.1} parent=1 // pred_region
      %s42 = ssub.s32 512, 512
      %43 = vsyncadd [#allocation6], %s42
      %s44 = sshll.u32 [#allocation7], 4
      %s45 = int_to_ptr.vmem [resolvable:$true] %s44
      %50 = dma.hbm_to_vmem [thread:$0]  %s3, 512, %s45, [#allocation6], 128, 128, 8
    $region17: #{tpu_custom_call.1} parent=1 // pred_fallthru
      _
    // Predicated region
    $region18: #{tpu_custom_call.1} parent=1 // pred_check
      _
    $region19: #{tpu_custom_call.1} parent=1 // pred_check_branch
      %52 = sbr.rel (0) target = $region21
    $region20: #{tpu_custom_call.1} parent=1 // pred_region
      _
    $region21: #{tpu_custom_call.1} parent=1 // pred_fallthru
      _
    // Predicated region
    $region22: #{tpu_custom_call.1} parent=1 // pred_check
      _
    $region23: #{tpu_custom_call.1} parent=1 // pred_check_branch
      %54 = sbr.rel (0) target = $region25
    $region24: #{tpu_custom_call.1} parent=1 // pred_region
      %55 = dma.done [#allocation3], 256
    $region25: #{tpu_custom_call.1} parent=1 // pred_fallthru
      _
    // Predicated region
    $region26: #{tpu_custom_call.1} parent=1 // pred_check
      _
    $region27: #{tpu_custom_call.1} parent=1 // pred_check_branch
      %57 = sbr.rel (0) target = $region29
    $region28: #{tpu_custom_call.1} parent=1 // pred_region
      %58 = dma.done [#allocation6], 512
    $region29: #{tpu_custom_call.1} parent=1 // pred_fallthru
      _
    // Predicated region
    $region30: #{tpu_custom_call.1} parent=1 // pred_check
      _
    $region31: #{tpu_custom_call.1} parent=1 // pred_check_branch
      %60 = sbr.rel (0) target = $region33
    $region32: #{tpu_custom_call.1} parent=1 // pred_region
      %61 = dma.done [#allocation6], 512
    $region33: #{tpu_custom_call.1} parent=1 // pred_fallthru
      _
    %v62 = vld [vmem:[#allocation2] sm:$0xff]
    %v63 = vld [vmem:[#allocation2 + $0x8] sm:$0xff]
    %v64 = vld [vmem:[#allocation5] sm:$0xff]
    %v65 = vld [vmem:[#allocation5 + $0x8] sm:$0xff]
    %v66 = vld [vmem:[#allocation5 + $0x10] sm:$0xff]
    %v67 = vld [vmem:[#allocation5 + $0x18] sm:$0xff]
    %v68 = vld [vmem:[%s2] sm:$0x1]
    %v70 = vlaneseq
    %v71 = vshrl.u32 %v70, 7
    %v72 = vsub.s32 0, %v71
    %v73 = vrot.slane %v68, %v72
    %vm75 = vcmask 261120
    %v77 = vsel %vm75, %v62, 0
    %v80 = vsel %vm75, %v63, 0
    %82 = vmatprep.subr.mxu0 0.0
    %83 = vmatpush1.msra.mxu0 %v64
    %84 = vmatprep.subr.mxu0 0.0
    %85 = vmatpush1.msra.mxu0 %v65
    %86 = vmatprep.subr.mxu0 0.0
    %87 = vmatpush1.msra.mxu0 %v66
    %88 = vmatprep.subr.mxu0 0.0
    %89 = vmatpush1.msra.mxu0 %v67
    %90 = vmatprep.subr.mxu0 0.0
    %91 = vmatpush1.msra.mxu0 0.0
    %92 = vmatprep.subr.mxu0 0.0
    %93 = vmatpush1.msra.mxu0 0.0
    %94 = vmatprep.subr.mxu0 0.0
    %95 = vmatpush1.msra.mxu0 0.0
    %96 = vmatprep.subr.mxu0 0.0
    %97 = vmatpush1.msra.mxu0 0.0
    %98 = vmatprep.subr.mxu0 0.0
    %99 = vmatpush1.msra.mxu0 0.0
    %100 = vmatprep.subr.mxu0 0.0
    %101 = vmatpush1.msra.mxu0 0.0
    %102 = vmatprep.subr.mxu0 0.0
    %103 = vmatpush1.msra.mxu0 0.0
    %104 = vmatprep.subr.mxu0 0.0
    %105 = vmatpush1.msra.mxu0 0.0
    %106 = vmatprep.subr.mxu0 0.0
    %107 = vmatpush1.msra.mxu0 0.0
    %108 = vmatprep.subr.mxu0 0.0
    %109 = vmatpush1.msra.mxu0 0.0
    %110 = vmatprep.subr.mxu0 0.0
    %111 = vmatpush1.msra.mxu0 0.0
    %112 = vmatprep.subr.mxu0 0.0
    %113 = vmatpush1.msra.mxu0 0.0
    %114 = vmatprep.subr.mxu0 0.0
    %115 = vmatpush1.msra.mxu0 0.0
    %116 = vmatprep.subr.mxu0 0.0
    %117 = vmatpush1.msra.mxu0 0.0
    %118 = vmatprep.subr.mxu0 0.0
    %119 = vmatpush1.msra.mxu0 0.0
    %120 = vmatprep.subr.mxu0 0.0
    %121 = vmatpush1.msra.mxu0 0.0
    %122 = vmatprep.subr.mxu0 0.0
    %123 = vmatpush1.msra.mxu0 0.0
    %124 = vmatprep.subr.mxu0 0.0
    %125 = vmatpush1.msra.mxu0 0.0
    %126 = vmatprep.subr.mxu0 0.0
    %127 = vmatpush1.msra.mxu0 0.0
    %128 = vmatprep.subr.mxu0 0.0
    %129 = vmatpush1.msra.mxu0 0.0
    %130 = vmatprep.subr.mxu0 0.0
    %131 = vmatpush1.msra.mxu0 0.0
    %132 = vmatprep.subr.mxu0 0.0
    %133 = vmatpush1.msra.mxu0 0.0
    %134 = vmatprep.subr.mxu0 0.0
    %135 = vmatpush1.msra.mxu0 0.0
    %136 = vmatprep.subr.mxu0 0.0
    %137 = vmatpush1.msra.mxu0 0.0
    %138 = vmatprep.subr.mxu0 0.0
    %139 = vmatpush1.msra.mxu0 0.0
    %140 = vmatprep.subr.mxu0 0.0
    %141 = vmatpush1.msra.mxu0 0.0
    %142 = vmatprep.subr.mxu0 0.0
    %143 = vmatpush1.msra.mxu0 0.0
    %144 = vmatprep.subr.mxu0 0.0
    %145 = vmatpush1.msra.mxu0 0.0
    %146 = vmatprep.mubr.f32.mxu0 0.0
    %147 = vmatmul.mubr.f32.gmra.mrb[0].mxu0 %v77
    %v148 = vpop.f32.mrb[0].mxu0
    %v149 = vadd.f32 %v73, %v148
    %v150 = vpop.f32.mrb[0].mxu0
    %151 = vmatprep.mubr.f32.mxu0 0.0
    %152 = vmatmul.mubr.f32.gmra.mrb[0].mxu0 %v80
    %v153 = vpop.f32.mrb[0].mxu0
    %v154 = vadd.f32 %v73, %v153
    %v155 = vpop.f32.mrb[0].mxu0
    %156 = vdwg.mxu0
    %v157 = vmul.f32 %v149, 0.5
    %v158 = vmul.f32 %v154, 0.5
    %v159 = vmul.f32 %v149, 0.70710677
    %v160 = vmul.f32 %v154, 0.70710677
    %v161 = verf.f32.pop %v159
    %v162 = verf.f32.pop %v160
    %v163 = vadd.f32 %v161, 1.0
    %v164 = vadd.f32 %v162, 1.0
    %v165 = vmul.f32 %v157, %v163
    %v166 = vmul.f32 %v158, %v164
    %v167 = vld [vmem:[#allocation7] sm:$0xff]
    %v168 = vld [vmem:[#allocation7 + $0x8] sm:$0xff]
    %v169 = vld [vmem:[#allocation7 + $0x10] sm:$0xff]
    %v170 = vld [vmem:[#allocation7 + $0x18] sm:$0xff]
    %v171 = vld [vmem:[%s4] sm:$0x1]
    %v173 = vlaneseq
    %v174 = vshrl.u32 %v173, 7
    %v175 = vsub.s32 0, %v174
    %v176 = vrot.slane %v171, %v175
    %v179 = vsel %vm75, %v165, 0
    %v182 = vsel %vm75, %v166, 0
    %184 = vmatprep.subr.mxu0 0.0
    %185 = vmatpush1.msra.mxu0 %v167
    %186 = vmatprep.subr.mxu0 0.0
    %187 = vmatpush1.msra.mxu0 %v168
    %188 = vmatprep.subr.mxu0 0.0
    %189 = vmatpush1.msra.mxu0 %v169
    %190 = vmatprep.subr.mxu0 0.0
    %191 = vmatpush1.msra.mxu0 %v170
    %192 = vmatprep.subr.mxu0 0.0
    %193 = vmatpush1.msra.mxu0 0.0
    %194 = vmatprep.subr.mxu0 0.0
    %195 = vmatpush1.msra.mxu0 0.0
    %196 = vmatprep.subr.mxu0 0.0
    %197 = vmatpush1.msra.mxu0 0.0
    %198 = vmatprep.subr.mxu0 0.0
    %199 = vmatpush1.msra.mxu0 0.0
    %200 = vmatprep.subr.mxu0 0.0
    %201 = vmatpush1.msra.mxu0 0.0
    %202 = vmatprep.subr.mxu0 0.0
    %203 = vmatpush1.msra.mxu0 0.0
    %204 = vmatprep.subr.mxu0 0.0
    %205 = vmatpush1.msra.mxu0 0.0
    %206 = vmatprep.subr.mxu0 0.0
    %207 = vmatpush1.msra.mxu0 0.0
    %208 = vmatprep.subr.mxu0 0.0
    %209 = vmatpush1.msra.mxu0 0.0
    %210 = vmatprep.subr.mxu0 0.0
    %211 = vmatpush1.msra.mxu0 0.0
    %212 = vmatprep.subr.mxu0 0.0
    %213 = vmatpush1.msra.mxu0 0.0
    %214 = vmatprep.subr.mxu0 0.0
    %215 = vmatpush1.msra.mxu0 0.0
    %216 = vmatprep.subr.mxu0 0.0
    %217 = vmatpush1.msra.mxu0 0.0
    %218 = vmatprep.subr.mxu0 0.0
    %219 = vmatpush1.msra.mxu0 0.0
    %220 = vmatprep.subr.mxu0 0.0
    %221 = vmatpush1.msra.mxu0 0.0
    %222 = vmatprep.subr.mxu0 0.0
    %223 = vmatpush1.msra.mxu0 0.0
    %224 = vmatprep.subr.mxu0 0.0
    %225 = vmatpush1.msra.mxu0 0.0
    %226 = vmatprep.subr.mxu0 0.0
    %227 = vmatpush1.msra.mxu0 0.0
    %228 = vmatprep.subr.mxu0 0.0
    %229 = vmatpush1.msra.mxu0 0.0
    %230 = vmatprep.subr.mxu0 0.0
    %231 = vmatpush1.msra.mxu0 0.0
    %232 = vmatprep.subr.mxu0 0.0
    %233 = vmatpush1.msra.mxu0 0.0
    %234 = vmatprep.subr.mxu0 0.0
    %235 = vmatpush1.msra.mxu0 0.0
    %236 = vmatprep.subr.mxu0 0.0
    %237 = vmatpush1.msra.mxu0 0.0
    %238 = vmatprep.subr.mxu0 0.0
    %239 = vmatpush1.msra.mxu0 0.0
    %240 = vmatprep.subr.mxu0 0.0
    %241 = vmatpush1.msra.mxu0 0.0
    %242 = vmatprep.subr.mxu0 0.0
    %243 = vmatpush1.msra.mxu0 0.0
    %244 = vmatprep.subr.mxu0 0.0
    %245 = vmatpush1.msra.mxu0 0.0
    %246 = vmatprep.subr.mxu0 0.0
    %247 = vmatpush1.msra.mxu0 0.0
    %248 = vmatprep.mubr.f32.mxu0 0.0
    %249 = vmatmul.mubr.f32.gmra.mrb[0].mxu0 %v179
    %v250 = vpop.f32.mrb[0].mxu0
    %v251 = vadd.f32 %v176, %v250
    %v252 = vpop.f32.mrb[0].mxu0
    %253 = vmatprep.mubr.f32.mxu0 0.0
    %254 = vmatmul.mubr.f32.gmra.mrb[0].mxu0 %v182
    %v255 = vpop.f32.mrb[0].mxu0
    %v256 = vadd.f32 %v176, %v255
    %v257 = vpop.f32.mrb[0].mxu0
    %258 = vdwg.mxu0
    %259 = vst.msk [vmem:[#allocation8] sm:$0xff] %vm75, %v251
    %260 = vst.msk [vmem:[#allocation8 + $0x8] sm:$0xff] %vm75, %v256
    // Predicated region
    $region34: #{tpu_custom_call.1} parent=1 // pred_check
      _
    $region35: #{tpu_custom_call.1} parent=1 // pred_check_branch
      %262 = sbr.rel (0) target = $region37
    $region36: #{tpu_custom_call.1} parent=1 // pred_region
      %s264 = ssub.s32 256, 256
      %265 = vsyncadd [#allocation4], %s264
      %s266 = sshll.u32 [#allocation8], 4
      %s267 = int_to_ptr.vmem [resolvable:$true] %s266
      %272 = dma.vmem_to_hbm [thread:$0]  %s267, 256, %s5, [#allocation4], 128, 128, 8
    $region37: #{tpu_custom_call.1} parent=1 // pred_fallthru
      _
    // Predicated region
    $region38: #{tpu_custom_call.1} parent=1 // pred_check
      _
    $region39: #{tpu_custom_call.1} parent=1 // pred_check_branch
      %274 = sbr.rel (0) target = $region41
    $region40: #{tpu_custom_call.1} parent=1 // pred_region
      %275 = dma.done [#allocation4], 256
    $region41: #{tpu_custom_call.1} parent=1 // pred_fallthru
      _
    %276 = vsyncpa [#allocation3], 1
    %277 = vsyncpa [#allocation6], 1
    %278 = vsyncpa [#allocation4], 1

</llo_original>
